<compile_context>
chip_gen: v6e
topology: v6e:2x2x1
jax: 0.10.0
libtpu: 0.0.40
codegen_flags: <defaults>
</compile_context>

<pallas_src>
import functools

import jax
import jax.numpy as jnp
from jax.experimental import pallas as pl
from jax.experimental.pallas import tpu as pltpu

_LANE = 128
_MAX_BLOCK_ROWS = 2048  # 2048 * 128 * 4B = 1 MiB per f32 buffer


def _normal_from_bits(shape):
    """Box-Muller N(0,1) from raw hardware PRNG bits (EUP transcendentals)."""
    b1 = pltpu.bitcast(pltpu.prng_random_bits(shape), jnp.uint32)
    b2 = pltpu.bitcast(pltpu.prng_random_bits(shape), jnp.uint32)
    scale24 = jnp.float32(1.0 / (1 << 24))
    u1 = (b1 >> jnp.uint32(8)).astype(jnp.float32) * scale24 + scale24  # (0, 1]
    u2 = (b2 >> jnp.uint32(8)).astype(jnp.float32) * scale24            # [0, 1)
    r = jnp.sqrt(-2.0 * jnp.log(u1))
    return r * jnp.cos(jnp.float32(2.0 * jnp.pi) * u2)


def _noise_kernel_prng(seed_ref, x_ref, o_ref, *, sigma):
    """TPU path: generate N(0,1) on-chip and fuse x + noise * (sigma * x)."""
    # Reseed per grid tile -> result is deterministic and core-assignment free.
    pltpu.prng_seed(seed_ref[0] + pl.program_id(0))
    x = x_ref[...].astype(jnp.float32)
    if hasattr(pltpu, "stateful_normal"):
        noise = pltpu.stateful_normal(x.shape, jnp.float32)
    else:
        noise = _normal_from_bits(x.shape)
    # TODO(synk): is_relative_detach only detaches the scale for autograd;
    # forward values are identical either way, so it is not represented here.
    o_ref[...] = (x + noise * (jnp.float32(sigma) * x)).astype(o_ref.dtype)


def _noise_kernel_precomputed(x_ref, n_ref, o_ref, *, sigma):
    """Portable path: noise supplied as an input, kernel fuses the math."""
    x = x_ref[...].astype(jnp.float32)
    noise = n_ref[...].astype(jnp.float32)
    o_ref[...] = (x + noise * (jnp.float32(sigma) * x)).astype(o_ref.dtype)


def gaussian_noise_forward(x, seed, *, sigma=1.0, training=True):
    """GaussianNoise.forward: identity when not training or sigma == 0."""
    if (not training) or sigma == 0:
        return x

    orig_shape = x.shape
    total = x.size

    # Lane-dense flat view (rows, 128); pad rows so the block divides evenly.
    rows = pl.cdiv(total, _LANE)
    block_rows = min(rows, _MAX_BLOCK_ROWS)
    padded_rows = pl.cdiv(rows, block_rows) * block_rows
    padded_total = padded_rows * _LANE

    flat = x.reshape(-1)
    if padded_total != total:
        flat = jnp.pad(flat, (0, padded_total - total))
    x2 = flat.reshape(padded_rows, _LANE)

    grid = (padded_rows // block_rows,)
    block = (block_rows, _LANE)
    out_shape = jax.ShapeDtypeStruct((padded_rows, _LANE), x.dtype)

    if jax.default_backend() == "tpu":
        seed_arr = jnp.asarray([seed], dtype=jnp.int32)
        out = pl.pallas_call(
            functools.partial(_noise_kernel_prng, sigma=float(sigma)),
            out_shape=out_shape,
            grid_spec=pltpu.PrefetchScalarGridSpec(
                num_scalar_prefetch=1,
                grid=grid,
                in_specs=[pl.BlockSpec(block, lambda i, s: (i, 0))],
                out_specs=pl.BlockSpec(block, lambda i, s: (i, 0)),
            ),
            compiler_params=pltpu.CompilerParams(
                dimension_semantics=("parallel",)),
        )(seed_arr, x2)
    else:
        # TODO(synk): non-TPU backends have no lowering for the on-chip PRNG
        # primitives (prng_seed / stateful_normal); generate the samples with
        # jax.random and only fuse the elementwise math in the kernel.
        noise = jax.random.normal(
            jax.random.PRNGKey(int(seed)), (padded_rows, _LANE), dtype=jnp.float32)
        out = pl.pallas_call(
            functools.partial(_noise_kernel_precomputed, sigma=float(sigma)),
            out_shape=out_shape,
            grid=grid,
            in_specs=[pl.BlockSpec(block, lambda i: (i, 0)),
                      pl.BlockSpec(block, lambda i: (i, 0))],
            out_specs=pl.BlockSpec(block, lambda i: (i, 0)),
        )(x2, noise)

    return out.reshape(-1)[:total].reshape(orig_shape)


if __name__ == "__main__":
    key = jax.random.PRNGKey(0)
    x = jax.random.normal(key, (2, 4, 16, 16), dtype=jnp.float32)

    # Training mode: x + N(0,1) * sigma * x.
    out = gaussian_noise_forward(x, seed=0, sigma=1.0, training=True)
    out = jax.block_until_ready(out)
    assert out.shape == x.shape, out.shape
    assert bool(jnp.all(jnp.isfinite(out)))
    assert not bool(jnp.allclose(out, x))  # noise was actually added

    # Eval mode (or sigma == 0): identity.
    out_eval = gaussian_noise_forward(x, seed=0, sigma=1.0, training=False)
    assert bool(jnp.array_equal(out_eval, x))
    out_zero = gaussian_noise_forward(x, seed=0, sigma=0.0, training=True)
    assert bool(jnp.array_equal(out_zero, x))

    print("KERNEL_OK")
</pallas_src>

<mosaic_0001>
module attributes {stable_mosaic.version = 11 : i64} {
  func.func @_noise_kernel_precomputed(%arg0: i32, %arg1: memref<16x128xf32, #tpu.memory_space<vmem>>, %arg2: memref<16x128xf32, #tpu.memory_space<vmem>>, %arg3: memref<16x128xf32, #tpu.memory_space<vmem>>) attributes {dimension_semantics = [#tpu.dimension_semantics<arbitrary>], iteration_bounds = array<i64: 1>, scalar_prefetch = 0 : i64, scratch_operands = 0 : i64, tpu.core_type = #tpu.core_type<tc>, window_params = [{transform_indices = @transform_0, window_bounds = array<i64: 16, 128>}, {transform_indices = @transform_1, window_bounds = array<i64: 16, 128>}, {transform_indices = @transform_2, window_bounds = array<i64: 16, 128>}]} {
    %c0 = arith.constant 0 : index
    %c0_0 = arith.constant 0 : index
    %0 = vector.load %arg1[%c0, %c0_0] : memref<16x128xf32, #tpu.memory_space<vmem>>, vector<16x128xf32>
    %c0_1 = arith.constant 0 : index
    %c0_2 = arith.constant 0 : index
    %1 = vector.load %arg2[%c0_1, %c0_2] : memref<16x128xf32, #tpu.memory_space<vmem>>, vector<16x128xf32>
    %cst = arith.constant 1.000000e+00 : f32
    %2 = vector.broadcast %cst : f32 to vector<16x128xf32>
    %3 = arith.mulf %2, %0 : vector<16x128xf32>
    %4 = arith.mulf %1, %3 : vector<16x128xf32>
    %5 = arith.addf %0, %4 : vector<16x128xf32>
    %c0_3 = arith.constant 0 : index
    %c0_4 = arith.constant 0 : index
    %6 = vector.load %arg3[%c0_3, %c0_4] : memref<16x128xf32, #tpu.memory_space<vmem>>, vector<16x128xf32>
    tpu.vector_store %arg3[%c0_3, %c0_4], %5 {strides = array<i32>} : memref<16x128xf32, #tpu.memory_space<vmem>>, vector<16x128xf32>,
    return
  }
  func.func @transform_0(%arg0: i32) -> (i32, i32) {
    %c0_i32 = arith.constant 0 : i32
    %c0_i32_0 = arith.constant 0 : i32
    return %arg0, %c0_i32 : i32, i32
  }
  func.func @transform_1(%arg0: i32) -> (i32, i32) {
    %c0_i32 = arith.constant 0 : i32
    %c0_i32_0 = arith.constant 0 : i32
    return %arg0, %c0_i32 : i32, i32
  }
  func.func @transform_2(%arg0: i32) -> (i32, i32) {
    %c0_i32 = arith.constant 0 : i32
    %c0_i32_0 = arith.constant 0 : i32
    return %arg0, %c0_i32 : i32, i32
  }
}

</mosaic_0001>

<llo_original>
// kernel: tpu_custom_call.1
$region0: #{tpu_custom_call.1}
  #allocation0 [shape = 'u32[]', space=smem, size = 0x4, offset = 0x4, fixed_abs, tag = 'smem constant byte address 0x4 - core index']
  #allocation1 [shape = 'u32[144,128]{1,0:T(1,128)}', space=vmem, size = 0x12000, scoped, tag = 'internal scratch']
  %s0 = inlined_call_operand.hbm [shape: f32[16,128], index: 0, kind: input, shape index: {}]
  %s1 = inlined_call_operand.hbm [shape: f32[16,128], index: 1, kind: input, shape index: {}]
  %s2 = inlined_call_operand.hbm [shape: f32[16,128], index: 2, kind: output, shape index: {}]
  %s3 = sld [smem:[#allocation0]]
  $region26: #{tpu_custom_call.1} parent=0
    _
  %s5 = ssub.s32 1, %s3
  %s6 = scalar_select 0, %s5, %s3
  $region1: #{tpu_custom_call.1} parent=0
    #allocation2 [shape = 'u8[8192]{0}', space=vmem, size = 0x2000, scoped, tag = 'input window, operand 0, single buffered']
    #allocation3 [shape = 's32[1]{0}', space=sflag, size = 0x4, scoped, tag = 'scoped memory for tpu_custom_call.1']
    #allocation4 [shape = 's32[1]{0}', space=sflag, size = 0x4, scoped, tag = 'scoped memory for tpu_custom_call.1']
    #allocation5 [shape = 'u8[8192]{0}', space=vmem, size = 0x2000, scoped, tag = 'input window, operand 1, single buffered']
    #allocation6 [shape = 's32[1]{0}', space=sflag, size = 0x4, scoped, tag = 'scoped memory for tpu_custom_call.1']
    #allocation7 [shape = 'u8[8192]{0}', space=vmem, size = 0x2000, scoped, tag = 'output window, operand 0, single buffered']
    %7 = vsyncpa [#allocation3], 0
    %8 = vsyncpa [#allocation6], 0
    %9 = vsyncpa [#allocation4], 0
    // Predicated region
    $region2: #{tpu_custom_call.1} parent=1 // pred_check
      _
    $region3: #{tpu_custom_call.1} parent=1 // pred_check_branch
      %11 = sbr.rel (0) target = $region5
    $region4: #{tpu_custom_call.1} parent=1 // pred_region
      %s13 = ssub.s32 256, 256
      %14 = vsyncadd [#allocation3], %s13
      %s15 = sshll.u32 [#allocation2], 4
      %s16 = int_to_ptr.vmem [resolvable:$true] %s15
      %21 = dma.hbm_to_vmem [thread:$0]  %s0, 256, %s16, [#allocation3], 128, 128, 8
    $region5: #{tpu_custom_call.1} parent=1 // pred_fallthru
      _
    // Predicated region
    $region6: #{tpu_custom_call.1} parent=1 // pred_check
      _
    $region7: #{tpu_custom_call.1} parent=1 // pred_check_branch
      %23 = sbr.rel (0) target = $region9
    $region8: #{tpu_custom_call.1} parent=1 // pred_region
      %s25 = ssub.s32 256, 256
      %26 = vsyncadd [#allocation6], %s25
      %s27 = sshll.u32 [#allocation5], 4
      %s28 = int_to_ptr.vmem [resolvable:$true] %s27
      %33 = dma.hbm_to_vmem [thread:$0]  %s1, 256, %s28, [#allocation6], 128, 128, 8
    $region9: #{tpu_custom_call.1} parent=1 // pred_fallthru
      _
    // Predicated region
    $region10: #{tpu_custom_call.1} parent=1 // pred_check
      _
    $region11: #{tpu_custom_call.1} parent=1 // pred_check_branch
      %35 = sbr.rel (0) target = $region13
    $region12: #{tpu_custom_call.1} parent=1 // pred_region
      %36 = dma.done [#allocation3], 256
    $region13: #{tpu_custom_call.1} parent=1 // pred_fallthru
      _
    // Predicated region
    $region14: #{tpu_custom_call.1} parent=1 // pred_check
      _
    $region15: #{tpu_custom_call.1} parent=1 // pred_check_branch
      %38 = sbr.rel (0) target = $region17
    $region16: #{tpu_custom_call.1} parent=1 // pred_region
      %39 = dma.done [#allocation6], 256
    $region17: #{tpu_custom_call.1} parent=1 // pred_fallthru
      _
    %v40 = vld [vmem:[#allocation2] sm:$0xff]
    %v41 = vld [vmem:[#allocation2 + $0x8] sm:$0xff]
    %v42 = vld [vmem:[#allocation5] sm:$0xff]
    %v43 = vld [vmem:[#allocation5 + $0x8] sm:$0xff]
    %v44 = vmul.f32 %v42, %v40
    %v45 = vmul.f32 %v43, %v41
    %v46 = vadd.f32 %v40, %v44
    %v47 = vadd.f32 %v41, %v45
    %48 = vst [vmem:[#allocation7] sm:$0xff] %v46
    %49 = vst [vmem:[#allocation7 + $0x8] sm:$0xff] %v47
    // Predicated region
    $region18: #{tpu_custom_call.1} parent=1 // pred_check
      _
    $region19: #{tpu_custom_call.1} parent=1 // pred_check_branch
      %51 = sbr.rel (0) target = $region21
    $region20: #{tpu_custom_call.1} parent=1 // pred_region
      %s53 = ssub.s32 256, 256
      %54 = vsyncadd [#allocation4], %s53
      %s55 = sshll.u32 [#allocation7], 4
      %s56 = int_to_ptr.vmem [resolvable:$true] %s55
      %61 = dma.vmem_to_hbm [thread:$0]  %s56, 256, %s2, [#allocation4], 128, 128, 8
    $region21: #{tpu_custom_call.1} parent=1 // pred_fallthru
      _
    // Predicated region
    $region22: #{tpu_custom_call.1} parent=1 // pred_check
      _
    $region23: #{tpu_custom_call.1} parent=1 // pred_check_branch
      %63 = sbr.rel (0) target = $region25
    $region24: #{tpu_custom_call.1} parent=1 // pred_region
      %64 = dma.done [#allocation4], 256
    $region25: #{tpu_custom_call.1} parent=1 // pred_fallthru
      _
    %65 = vsyncpa [#allocation3], 1
    %66 = vsyncpa [#allocation6], 1
    %67 = vsyncpa [#allocation4], 1

</llo_original>
